<compile_context>
chip_gen: v5e
topology: v5e:2x2
jax: 0.10.0
libtpu: 0.0.40
codegen_flags: <defaults>
</compile_context>

<pallas_src>
import functools

import jax
import jax.numpy as jnp
from jax.experimental import pallas as pl
from jax.experimental.pallas import tpu as pltpu

_LANE = 128
_SUBLANE = 8


def _round_up(x, m):
    return (x + m - 1) // m * m


# ----------------------------------------------------------------------------
# Fused kernel: GEMM1 + bias + L2-normalize/temp + GEMM2 (single M-tile step)
# ----------------------------------------------------------------------------
def _classifier_kernel(x_ref, w1_ref, b1_ref, w2_ref, o_ref, *, temp):
    # GEMM1: (tm, K) @ (K, H) with bf16 MXU operands, f32 accumulation.
    h = jnp.dot(x_ref[...], w1_ref[...], preferred_element_type=jnp.float32)
    h = h + b1_ref[...]                                   # (tm, H), f32

    # F.normalize(p=2, dim=1, eps=1e-12) followed by division by temp.
    sq = jnp.sum(h * h, axis=-1, keepdims=True)
    inv = jax.lax.rsqrt(jnp.maximum(sq, 1e-24))           # == 1/max(||h||,1e-12)
    hn = h * (inv * (1.0 / temp))

    # GEMM2: (tm, H) @ (H, Npad) -> lane-dense output (Npad multiple of 128).
    o_ref[...] = jnp.dot(
        hn.astype(jnp.bfloat16),
        w2_ref[...],
        preferred_element_type=jnp.float32,
    ).astype(o_ref.dtype)


# ----------------------------------------------------------------------------
# Parameter init (nn.Linear-style) and one-time prep (transpose/pad/cast)
# ----------------------------------------------------------------------------
def init_classifier_params(key, in_dim, hidden_dim=512, num_classes=65):
    k1, k2, k3 = jax.random.split(key, 3)
    bound1 = 1.0 / (in_dim ** 0.5)
    bound2 = 1.0 / (hidden_dim ** 0.5)
    return {
        "fc1_w": jax.random.uniform(k1, (hidden_dim, in_dim), jnp.float32,
                                    -bound1, bound1),
        "fc1_b": jax.random.uniform(k2, (hidden_dim,), jnp.float32,
                                    -bound1, bound1),
        "fc2_w": jax.random.uniform(k3, (num_classes, hidden_dim), jnp.float32,
                                    -bound2, bound2),
    }


def _prepare_params(params):
    w1, b1, w2 = params["fc1_w"], params["fc1_b"], params["fc2_w"]
    hidden, in_dim = w1.shape
    num_classes = w2.shape[0]

    # Pad to lane (128) granularity only — all the hardware needs.
    k_pad = _round_up(max(in_dim, _LANE), _LANE)
    h_pad = _round_up(hidden, _LANE)
    n_pad = _round_up(num_classes, _LANE)

    w1t = jnp.zeros((k_pad, h_pad), jnp.float32).at[:in_dim, :hidden].set(w1.T)
    w2t = jnp.zeros((h_pad, n_pad), jnp.float32).at[:hidden, :num_classes].set(w2.T)
    b1p = jnp.zeros((1, h_pad), jnp.float32).at[0, :hidden].set(b1)

    return {
        "w1t": w1t.astype(jnp.bfloat16),     # (k_pad, h_pad)  bf16, resident
        "w2t": w2t.astype(jnp.bfloat16),     # (h_pad, n_pad)  bf16, resident
        "b1": b1p,                           # (1, h_pad)      f32
        "dims": (in_dim, hidden, num_classes, k_pad, h_pad, n_pad),
    }


# ----------------------------------------------------------------------------
# Forward wrapper
# ----------------------------------------------------------------------------
def make_classifier_forward(params, *, temp=0.05, tm=256):
    prepped = _prepare_params(params)
    in_dim, hidden, num_classes, k_pad, h_pad, n_pad = prepped["dims"]
    w1t, b1p, w2t = prepped["w1t"], prepped["b1"], prepped["w2t"]

    def forward(x, reverse=False):
        # TODO(synk): grad_reverse is a gradient-only op; forward is identity.
        del reverse
        b = x.shape[0]

        m_min = _round_up(b, _SUBLANE)
        tm_eff = min(tm, m_min)
        # v7x megacore: prefer >= 2 M tiles so both TensorCores get work;
        # shrink the tile rather than leaving one core idle (no-op when the
        # batch fits in a single sublane group).
        if m_min // tm_eff < 2 and m_min > _SUBLANE:
            tm_eff = max(_SUBLANE, _round_up((m_min + 1) // 2, _SUBLANE))
        m_pad = _round_up(b, tm_eff)

        # Single fused pad+cast (or just a cast if already aligned) — no
        # separate zero-filled f32 HBM round-trip.
        if b == m_pad and in_dim == k_pad:
            xp = x.astype(jnp.bfloat16)
        else:
            xp = jnp.pad(x, ((0, m_pad - b), (0, k_pad - in_dim))
                         ).astype(jnp.bfloat16)

        grid = (m_pad // tm_eff,)
        kernel = functools.partial(_classifier_kernel, temp=temp)

        flops = 2 * m_pad * k_pad * h_pad + 2 * m_pad * h_pad * n_pad
        bytes_accessed = (m_pad * k_pad * 2        # x (bf16)
                          + k_pad * h_pad * 2      # W1^T (bf16, once)
                          + h_pad * n_pad * 2      # W2^T (bf16, once)
                          + h_pad * 4              # bias
                          + m_pad * n_pad * 4)     # logits (f32)

        out = pl.pallas_call(
            kernel,
            out_shape=jax.ShapeDtypeStruct((m_pad, n_pad), jnp.float32),
            grid_spec=pltpu.PrefetchScalarGridSpec(
                num_scalar_prefetch=0,
                grid=grid,
                in_specs=[
                    pl.BlockSpec((tm_eff, k_pad), lambda m: (m, 0)),   # x tile
                    pl.BlockSpec((k_pad, h_pad), lambda m: (0, 0)),    # W1^T (resident)
                    pl.BlockSpec((1, h_pad), lambda m: (0, 0)),        # bias
                    pl.BlockSpec((h_pad, n_pad), lambda m: (0, 0)),    # W2^T (resident)
                ],
                out_specs=pl.BlockSpec((tm_eff, n_pad), lambda m: (m, 0)),
            ),
            compiler_params=pltpu.CompilerParams(
                dimension_semantics=("parallel",),
                vmem_limit_bytes=32 * 1024 * 1024,
            ),
            cost_estimate=pl.CostEstimate(
                flops=flops,
                transcendentals=m_pad,
                bytes_accessed=bytes_accessed,
            ),
        )(xp, w1t, b1p, w2t)

        return out[:b, :num_classes]

    return jax.jit(forward, static_argnames=("reverse",))


# ----------------------------------------------------------------------------
if __name__ == "__main__":
    IN_DIM, HIDDEN, NUM_CLASSES, TEMP = 256, 512, 65, 0.05
    BATCH = 8

    key = jax.random.PRNGKey(0)
    kp, kx = jax.random.split(key)
    params = init_classifier_params(kp, IN_DIM, HIDDEN, NUM_CLASSES)
    x = jax.random.normal(kx, (BATCH, IN_DIM), jnp.float32)

    forward = make_classifier_forward(params, temp=TEMP)
    out = jax.block_until_ready(forward(x))

    assert out.shape == (BATCH, NUM_CLASSES), out.shape
    assert bool(jnp.all(jnp.isfinite(out)))

    # Reference in plain JAX (matching the kernel's bf16 MXU casting).
    w1t_ref = params["fc1_w"].T.astype(jnp.bfloat16)
    w2t_ref = params["fc2_w"].T.astype(jnp.bfloat16)
    h = jnp.dot(x.astype(jnp.bfloat16), w1t_ref,
                preferred_element_type=jnp.float32) + params["fc1_b"][None, :]
    norm = jnp.sqrt(jnp.sum(h * h, axis=-1, keepdims=True))
    hn = h / jnp.maximum(norm, 1e-12) / TEMP
    ref = jnp.dot(hn.astype(jnp.bfloat16), w2t_ref,
                  preferred_element_type=jnp.float32)
    assert jnp.allclose(out, ref, rtol=2e-2, atol=2e-2), \
        float(jnp.max(jnp.abs(out - ref)))

    print("KERNEL_OK")
</pallas_src>

<mosaic_0001>
module attributes {stable_mosaic.version = 11 : i64} {
  func.func @_classifier_kernel(%arg0: i32, %arg1: memref<8x256xbf16, #tpu.memory_space<vmem>>, %arg2: memref<256x512xbf16, #tpu.memory_space<vmem>>, %arg3: memref<1x512xf32, #tpu.memory_space<vmem>>, %arg4: memref<512x128xbf16, #tpu.memory_space<vmem>>, %arg5: memref<8x128xf32, #tpu.memory_space<vmem>>) attributes {dimension_semantics = [#tpu.dimension_semantics<parallel>], iteration_bounds = array<i64: 1>, scalar_prefetch = 0 : i64, scratch_operands = 0 : i64, tpu.core_type = #tpu.core_type<tc>, window_params = [{transform_indices = @transform_0, window_bounds = array<i64: 8, 256>}, {pipeline_mode = #tpu.pipeline_mode<synchronous>, transform_indices = @transform_1, window_bounds = array<i64: 256, 512>}, {pipeline_mode = #tpu.pipeline_mode<synchronous>, transform_indices = @transform_2, window_bounds = array<i64: 1, 512>}, {pipeline_mode = #tpu.pipeline_mode<synchronous>, transform_indices = @transform_3, window_bounds = array<i64: 512, 128>}, {transform_indices = @transform_4, window_bounds = array<i64: 8, 128>}]} {
    %c0 = arith.constant 0 : index
    %c0_0 = arith.constant 0 : index
    %0 = vector.load %arg1[%c0, %c0_0] : memref<8x256xbf16, #tpu.memory_space<vmem>>, vector<8x256xbf16>
    %c0_1 = arith.constant 0 : index
    %c0_2 = arith.constant 0 : index
    %1 = vector.load %arg2[%c0_1, %c0_2] : memref<256x512xbf16, #tpu.memory_space<vmem>>, vector<256x512xbf16>
    %cst = arith.constant dense<0.000000e+00> : vector<8x512xf32>
    %2 = tpu.matmul %0, %1, %cst {dimension_numbers = #tpu.dot_dimension_numbers<[1], [0], [0], [1], [0, 0, 1, 1], [], []>} : vector<8x256xbf16>, vector<256x512xbf16>, vector<8x512xf32> -> vector<8x512xf32>
    %c0_3 = arith.constant 0 : index
    %c0_4 = arith.constant 0 : index
    %3 = vector.load %arg3[%c0_3, %c0_4] : memref<1x512xf32, #tpu.memory_space<vmem>>, vector<1x512xf32>
    %4 = vector.broadcast %3 : vector<1x512xf32> to vector<8x512xf32>
    %5 = arith.addf %2, %4 : vector<8x512xf32>
    %6 = arith.mulf %5, %5 : vector<8x512xf32>
    %cst_5 = arith.constant dense<0.000000e+00> : vector<8xf32>
    %7 = vector.multi_reduction <add>, %6, %cst_5 [1] : vector<8x512xf32> to vector<8xf32>
    %8 = vector.shape_cast %7 : vector<8xf32> to vector<8x1xf32>
    %cst_6 = arith.constant 1.000000e-24 : f32
    %9 = vector.broadcast %cst_6 : f32 to vector<8x1xf32>
    %10 = arith.maximumf %8, %9 : vector<8x1xf32>
    %11 = math.rsqrt %10 : vector<8x1xf32>
    %cst_7 = arith.constant 2.000000e+01 : f32
    %12 = vector.broadcast %cst_7 : f32 to vector<8x1xf32>
    %13 = arith.mulf %11, %12 : vector<8x1xf32>
    %14 = vector.broadcast %13 : vector<8x1xf32> to vector<8x512xf32>
    %15 = arith.mulf %5, %14 : vector<8x512xf32>
    %16 = arith.truncf %15 : vector<8x512xf32> to vector<8x512xbf16>
    %c0_8 = arith.constant 0 : index
    %c0_9 = arith.constant 0 : index
    %17 = vector.load %arg4[%c0_8, %c0_9] : memref<512x128xbf16, #tpu.memory_space<vmem>>, vector<512x128xbf16>
    %cst_10 = arith.constant dense<0.000000e+00> : vector<8x128xf32>
    %18 = tpu.matmul %16, %17, %cst_10 {dimension_numbers = #tpu.dot_dimension_numbers<[1], [0], [0], [1], [0, 0, 1, 1], [], []>} : vector<8x512xbf16>, vector<512x128xbf16>, vector<8x128xf32> -> vector<8x128xf32>
    %c0_11 = arith.constant 0 : index
    %c0_12 = arith.constant 0 : index
    %19 = vector.load %arg5[%c0_11, %c0_12] : memref<8x128xf32, #tpu.memory_space<vmem>>, vector<8x128xf32>
    tpu.vector_store %arg5[%c0_11, %c0_12], %18 {strides = array<i32>} : memref<8x128xf32, #tpu.memory_space<vmem>>, vector<8x128xf32>,
    return
  }
  func.func @transform_0(%arg0: i32) -> (i32, i32) {
    %c0_i32 = arith.constant 0 : i32
    %c0_i32_0 = arith.constant 0 : i32
    return %arg0, %c0_i32 : i32, i32
  }
  func.func @transform_1(%arg0: i32) -> (i32, i32) {
    %c0_i32 = arith.constant 0 : i32
    %c0_i32_0 = arith.constant 0 : i32
    %c0_i32_1 = arith.constant 0 : i32
    return %c0_i32, %c0_i32_0 : i32, i32
  }
  func.func @transform_2(%arg0: i32) -> (i32, i32) {
    %c0_i32 = arith.constant 0 : i32
    %c0_i32_0 = arith.constant 0 : i32
    %c0_i32_1 = arith.constant 0 : i32
    return %c0_i32, %c0_i32_0 : i32, i32
  }
  func.func @transform_3(%arg0: i32) -> (i32, i32) {
    %c0_i32 = arith.constant 0 : i32
    %c0_i32_0 = arith.constant 0 : i32
    %c0_i32_1 = arith.constant 0 : i32
    return %c0_i32, %c0_i32_0 : i32, i32
  }
  func.func @transform_4(%arg0: i32) -> (i32, i32) {
    %c0_i32 = arith.constant 0 : i32
    %c0_i32_0 = arith.constant 0 : i32
    return %arg0, %c0_i32 : i32, i32
  }
}

</mosaic_0001>

<llo_original>
// kernel: forward.1
$region0: #{forward.1}
  #allocation0 [shape = 'u32[]', space=smem, size = 0x4, offset = 0x4, fixed_abs, tag = 'smem constant byte address 0x4 - core index']
  #allocation1 [shape = 'u32[72,128]{1,0:T(1,128)}', space=vmem, size = 0x9000, scoped, tag = 'internal scratch']
  %s0 = inlined_call_operand.vmem [shape: bf16[8,256], index: 0, kind: input, shape index: {}]
  %s1 = inlined_call_operand.hbm [shape: bf16[256,512], index: 1, kind: input, shape index: {}]
  %s2 = inlined_call_operand.vmem [shape: f32[1,512], index: 2, kind: input, shape index: {}]
  %s3 = inlined_call_operand.hbm [shape: bf16[512,128], index: 3, kind: input, shape index: {}]
  %s4 = inlined_call_operand.hbm [shape: f32[8,128], index: 4, kind: output, shape index: {}]
  %s5 = sld [smem:[#allocation0]]
  $region34: #{forward.1} parent=0
    _
  %s7 = ssub.s32 1, %s5
  %s8 = scalar_select 0, %s7, %s5
  $region1: #{forward.1} parent=0
    #allocation2 [shape = 'u8[262144]{0}', space=vmem, size = 0x40000, scoped, tag = 'input window, operand 1, single buffered']
    #allocation3 [shape = 's32[1]{0}', space=sflag, size = 0x4, scoped, tag = 'scoped memory for forward.1']
    #allocation4 [shape = 's32[1]{0}', space=sflag, size = 0x4, scoped, tag = 'scoped memory for forward.1']
    #allocation5 [shape = 'u8[131072]{0}', space=vmem, size = 0x20000, scoped, tag = 'input window, operand 3, single buffered']
    #allocation6 [shape = 's32[1]{0}', space=sflag, size = 0x4, scoped, tag = 'scoped memory for forward.1']
    #allocation7 [shape = 'u8[4096]{0}', space=vmem, size = 0x1000, scoped, tag = 'output window, operand 0, single buffered']
    %9 = vsyncpa [#allocation3], 0
    %10 = vsyncpa [#allocation6], 0
    %11 = vsyncpa [#allocation4], 0
    // Predicated region
    $region2: #{forward.1} parent=1 // pred_check
      _
    $region3: #{forward.1} parent=1 // pred_check_branch
      %13 = sbr.rel (0) target = $region5
    $region4: #{forward.1} parent=1 // pred_region
      _
    $region5: #{forward.1} parent=1 // pred_fallthru
      _
    // Predicated region
    $region6: #{forward.1} parent=1 // pred_check
      _
    $region7: #{forward.1} parent=1 // pred_check_branch
      %15 = sbr.rel (0) target = $region9
    $region8: #{forward.1} parent=1 // pred_region
      %17 = vsyncadd [#allocation3], 0
      %s18 = sshll.u32 %s1, 4
      %s19 = int_to_ptr.hbm [resolvable:$true] %s18
      %s20 = sshll.u32 [#allocation2], 4
      %s21 = int_to_ptr.vmem [resolvable:$true] %s20
      %26 = dma.hbm_to_vmem [thread:$0]  %s19, 8192, %s21, [#allocation3], 256, 256, 16
    $region9: #{forward.1} parent=1 // pred_fallthru
      _
    // Predicated region
    $region10: #{forward.1} parent=1 // pred_check
      _
    $region11: #{forward.1} parent=1 // pred_check_branch
      %28 = sbr.rel (0) target = $region13
    $region12: #{forward.1} parent=1 // pred_region
      _
    $region13: #{forward.1} parent=1 // pred_fallthru
      _
    // Predicated region
    $region14: #{forward.1} parent=1 // pred_check
      _
    $region15: #{forward.1} parent=1 // pred_check_branch
      %30 = sbr.rel (0) target = $region17
    $region16: #{forward.1} parent=1 // pred_region
      %32 = vsyncadd [#allocation6], 0
      %s33 = sshll.u32 %s3, 4
      %s34 = int_to_ptr.hbm [resolvable:$true] %s33
      %s35 = sshll.u32 [#allocation5], 4
      %s36 = int_to_ptr.vmem [resolvable:$true] %s35
      %41 = dma.hbm_to_vmem [thread:$0]  %s34, 4096, %s36, [#allocation6], 64, 64, 4
    $region17: #{forward.1} parent=1 // pred_fallthru
      _
    // Predicated region
    $region18: #{forward.1} parent=1 // pred_check
      _
    $region19: #{forward.1} parent=1 // pred_check_branch
      %43 = sbr.rel (0) target = $region21
    $region20: #{forward.1} parent=1 // pred_region
      %45 = dma.done [#allocation3], 8192
    $region21: #{forward.1} parent=1 // pred_fallthru
      _
    // Predicated region
    $region22: #{forward.1} parent=1 // pred_check
      _
    $region23: #{forward.1} parent=1 // pred_check_branch
      %47 = sbr.rel (0) target = $region25
    $region24: #{forward.1} parent=1 // pred_region
      %49 = dma.done [#allocation6], 4096
    $region25: #{forward.1} parent=1 // pred_fallthru
      _
    %v50 = vld [vmem:[%s0] sm:$0xff]
    %v51 = vld [vmem:[#allocation2] sm:$0xff]
    %v52 = vld [vmem:[#allocation2 + $0x8] sm:$0xff]
    %v53 = vld [vmem:[#allocation2 + $0x10] sm:$0xff]
    %v54 = vld [vmem:[#allocation2 + $0x18] sm:$0xff]
    %v55 = vld [vmem:[#allocation2 + $0x20] sm:$0xff]
    %v56 = vld [vmem:[#allocation2 + $0x28] sm:$0xff]
    %v57 = vld [vmem:[#allocation2 + $0x30] sm:$0xff]
    %v58 = vld [vmem:[#allocation2 + $0x38] sm:$0xff]
    %v59 = vld [vmem:[#allocation2 + $0x40] sm:$0xff]
    %v60 = vld [vmem:[#allocation2 + $0x48] sm:$0xff]
    %v61 = vld [vmem:[#allocation2 + $0x50] sm:$0xff]
    %v62 = vld [vmem:[#allocation2 + $0x58] sm:$0xff]
    %v63 = vld [vmem:[#allocation2 + $0x60] sm:$0xff]
    %v64 = vld [vmem:[#allocation2 + $0x68] sm:$0xff]
    %v65 = vld [vmem:[#allocation2 + $0x70] sm:$0xff]
    %v66 = vld [vmem:[#allocation2 + $0x78] sm:$0xff]
    %v67 = vld [vmem:[#allocation2 + $0x80] sm:$0xff]
    %v68 = vld [vmem:[#allocation2 + $0x88] sm:$0xff]
    %v69 = vld [vmem:[#allocation2 + $0x90] sm:$0xff]
    %v70 = vld [vmem:[#allocation2 + $0x98] sm:$0xff]
    %v71 = vld [vmem:[#allocation2 + $0xa0] sm:$0xff]
    %v72 = vld [vmem:[#allocation2 + $0xa8] sm:$0xff]
    %v73 = vld [vmem:[#allocation2 + $0xb0] sm:$0xff]
    %v74 = vld [vmem:[#allocation2 + $0xb8] sm:$0xff]
    %v75 = vld [vmem:[#allocation2 + $0xc0] sm:$0xff]
    %v76 = vld [vmem:[#allocation2 + $0xc8] sm:$0xff]
    %v77 = vld [vmem:[#allocation2 + $0xd0] sm:$0xff]
    %v78 = vld [vmem:[#allocation2 + $0xd8] sm:$0xff]
    %v79 = vld [vmem:[#allocation2 + $0xe0] sm:$0xff]
    %v80 = vld [vmem:[#allocation2 + $0xe8] sm:$0xff]
    %v81 = vld [vmem:[#allocation2 + $0xf0] sm:$0xff]
    %v82 = vld [vmem:[#allocation2 + $0xf8] sm:$0xff]
    %v83 = vld [vmem:[#allocation2 + $0x100] sm:$0xff]
    %v84 = vld [vmem:[#allocation2 + $0x108] sm:$0xff]
    %v85 = vld [vmem:[#allocation2 + $0x110] sm:$0xff]
    %v86 = vld [vmem:[#allocation2 + $0x118] sm:$0xff]
    %v87 = vld [vmem:[#allocation2 + $0x120] sm:$0xff]
    %v88 = vld [vmem:[#allocation2 + $0x128] sm:$0xff]
    %v89 = vld [vmem:[#allocation2 + $0x130] sm:$0xff]
    %v90 = vld [vmem:[#allocation2 + $0x138] sm:$0xff]
    %v91 = vld [vmem:[#allocation2 + $0x140] sm:$0xff]
    %v92 = vld [vmem:[#allocation2 + $0x148] sm:$0xff]
    %v93 = vld [vmem:[#allocation2 + $0x150] sm:$0xff]
    %v94 = vld [vmem:[#allocation2 + $0x158] sm:$0xff]
    %v95 = vld [vmem:[#allocation2 + $0x160] sm:$0xff]
    %v96 = vld [vmem:[#allocation2 + $0x168] sm:$0xff]
    %v97 = vld [vmem:[#allocation2 + $0x170] sm:$0xff]
    %v98 = vld [vmem:[#allocation2 + $0x178] sm:$0xff]
    %v99 = vld [vmem:[#allocation2 + $0x180] sm:$0xff]
    %v100 = vld [vmem:[#allocation2 + $0x188] sm:$0xff]
    %v101 = vld [vmem:[#allocation2 + $0x190] sm:$0xff]
    %v102 = vld [vmem:[#allocation2 + $0x198] sm:$0xff]
    %v103 = vld [vmem:[#allocation2 + $0x1a0] sm:$0xff]
    %v104 = vld [vmem:[#allocation2 + $0x1a8] sm:$0xff]
    %v105 = vld [vmem:[#allocation2 + $0x1b0] sm:$0xff]
    %v106 = vld [vmem:[#allocation2 + $0x1b8] sm:$0xff]
    %v107 = vld [vmem:[#allocation2 + $0x1c0] sm:$0xff]
    %v108 = vld [vmem:[#allocation2 + $0x1c8] sm:$0xff]
    %v109 = vld [vmem:[#allocation2 + $0x1d0] sm:$0xff]
    %v110 = vld [vmem:[#allocation2 + $0x1d8] sm:$0xff]
    %v111 = vld [vmem:[#allocation2 + $0x1e0] sm:$0xff]
    %v112 = vld [vmem:[#allocation2 + $0x1e8] sm:$0xff]
    %v113 = vld [vmem:[#allocation2 + $0x1f0] sm:$0xff]
    %v114 = vld [vmem:[#allocation2 + $0x1f8] sm:$0xff]
    %v115 = vld [vmem:[%s2] sm:$0xf]
    %v117 = vperm.slane %v115, 0
    %v118 = vperm.slane %v115, 1
    %v119 = vperm.slane %v115, 2
    %v120 = vperm.slane %v115, 3
    %v126 = vunpack.c.l.b16 %v50
    %v127 = vunpack.c.h.b16 %v50
    %v128 = vpack.c.b16 %v126, %v126
    %v129 = vpack.c.b16 %v127, %v127
    %v196 = vunpack.c.l.b16 %v51
    %v197 = vunpack.c.h.b16 %v51
    %v198 = vunpack.c.l.b16 %v52
    %v199 = vunpack.c.h.b16 %v52
    %v200 = vunpack.c.l.b16 %v53
    %v201 = vunpack.c.h.b16 %v53
    %v202 = vunpack.c.l.b16 %v54
    %v203 = vunpack.c.h.b16 %v54
    %v204 = vunpack.c.l.b16 %v55
    %v205 = vunpack.c.h.b16 %v55
    %v206 = vunpack.c.l.b16 %v56
    %v207 = vunpack.c.h.b16 %v56
    %v208 = vunpack.c.l.b16 %v57
    %v209 = vunpack.c.h.b16 %v57
    %v210 = vunpack.c.l.b16 %v58
    %v211 = vunpack.c.h.b16 %v58
    %v212 = vunpack.c.l.b16 %v59
    %v213 = vunpack.c.h.b16 %v59
    %v214 = vunpack.c.l.b16 %v60
    %v215 = vunpack.c.h.b16 %v60
    %v216 = vunpack.c.l.b16 %v61
    %v217 = vunpack.c.h.b16 %v61
    %v218 = vunpack.c.l.b16 %v62
    %v219 = vunpack.c.h.b16 %v62
    %v220 = vunpack.c.l.b16 %v63
    %v221 = vunpack.c.h.b16 %v63
    %v222 = vunpack.c.l.b16 %v64
    %v223 = vunpack.c.h.b16 %v64
    %v224 = vunpack.c.l.b16 %v65
    %v225 = vunpack.c.h.b16 %v65
    %v226 = vunpack.c.l.b16 %v66
    %v227 = vunpack.c.h.b16 %v66
    %v228 = vunpack.c.l.b16 %v67
    %v229 = vunpack.c.h.b16 %v67
    %v230 = vunpack.c.l.b16 %v68
    %v231 = vunpack.c.h.b16 %v68
    %v232 = vunpack.c.l.b16 %v69
    %v233 = vunpack.c.h.b16 %v69
    %v234 = vunpack.c.l.b16 %v70
    %v235 = vunpack.c.h.b16 %v70
    %v236 = vunpack.c.l.b16 %v71
    %v237 = vunpack.c.h.b16 %v71
    %v238 = vunpack.c.l.b16 %v72
    %v239 = vunpack.c.h.b16 %v72
    %v240 = vunpack.c.l.b16 %v73
    %v241 = vunpack.c.h.b16 %v73
    %v242 = vunpack.c.l.b16 %v74
    %v243 = vunpack.c.h.b16 %v74
    %v244 = vunpack.c.l.b16 %v75
    %v245 = vunpack.c.h.b16 %v75
    %v246 = vunpack.c.l.b16 %v76
    %v247 = vunpack.c.h.b16 %v76
    %v248 = vunpack.c.l.b16 %v77
    %v249 = vunpack.c.h.b16 %v77
    %v250 = vunpack.c.l.b16 %v78
    %v251 = vunpack.c.h.b16 %v78
    %v252 = vunpack.c.l.b16 %v79
    %v253 = vunpack.c.h.b16 %v79
    %v254 = vunpack.c.l.b16 %v80
    %v255 = vunpack.c.h.b16 %v80
    %v256 = vunpack.c.l.b16 %v81
    %v257 = vunpack.c.h.b16 %v81
    %v258 = vunpack.c.l.b16 %v82
    %v259 = vunpack.c.h.b16 %v82
    %v260 = vunpack.c.l.b16 %v83
    %v261 = vunpack.c.h.b16 %v83
    %v262 = vunpack.c.l.b16 %v84
    %v263 = vunpack.c.h.b16 %v84
    %v264 = vunpack.c.l.b16 %v85
    %v265 = vunpack.c.h.b16 %v85
    %v266 = vunpack.c.l.b16 %v86
    %v267 = vunpack.c.h.b16 %v86
    %v268 = vunpack.c.l.b16 %v87
    %v269 = vunpack.c.h.b16 %v87
    %v270 = vunpack.c.l.b16 %v88
    %v271 = vunpack.c.h.b16 %v88
    %v272 = vunpack.c.l.b16 %v89
    %v273 = vunpack.c.h.b16 %v89
    %v274 = vunpack.c.l.b16 %v90
    %v275 = vunpack.c.h.b16 %v90
    %v276 = vunpack.c.l.b16 %v91
    %v277 = vunpack.c.h.b16 %v91
    %v278 = vunpack.c.l.b16 %v92
    %v279 = vunpack.c.h.b16 %v92
    %v280 = vunpack.c.l.b16 %v93
    %v281 = vunpack.c.h.b16 %v93
    %v282 = vunpack.c.l.b16 %v94
    %v283 = vunpack.c.h.b16 %v94
    %v284 = vunpack.c.l.b16 %v95
    %v285 = vunpack.c.h.b16 %v95
    %v286 = vunpack.c.l.b16 %v96
    %v287 = vunpack.c.h.b16 %v96
    %v288 = vunpack.c.l.b16 %v97
    %v289 = vunpack.c.h.b16 %v97
    %v290 = vunpack.c.l.b16 %v98
    %v291 = vunpack.c.h.b16 %v98
    %v292 = vunpack.c.l.b16 %v99
    %v293 = vunpack.c.h.b16 %v99
    %v294 = vunpack.c.l.b16 %v100
    %v295 = vunpack.c.h.b16 %v100
    %v296 = vunpack.c.l.b16 %v101
    %v297 = vunpack.c.h.b16 %v101
    %v298 = vunpack.c.l.b16 %v102
    %v299 = vunpack.c.h.b16 %v102
    %v300 = vunpack.c.l.b16 %v103
    %v301 = vunpack.c.h.b16 %v103
    %v302 = vunpack.c.l.b16 %v104
    %v303 = vunpack.c.h.b16 %v104
    %v304 = vunpack.c.l.b16 %v105
    %v305 = vunpack.c.h.b16 %v105
    %v306 = vunpack.c.l.b16 %v106
    %v307 = vunpack.c.h.b16 %v106
    %v308 = vunpack.c.l.b16 %v107
    %v309 = vunpack.c.h.b16 %v107
    %v310 = vunpack.c.l.b16 %v108
    %v311 = vunpack.c.h.b16 %v108
    %v312 = vunpack.c.l.b16 %v109
    %v313 = vunpack.c.h.b16 %v109
    %v314 = vunpack.c.l.b16 %v110
    %v315 = vunpack.c.h.b16 %v110
    %v316 = vunpack.c.l.b16 %v111
    %v317 = vunpack.c.h.b16 %v111
    %v318 = vunpack.c.l.b16 %v112
    %v319 = vunpack.c.h.b16 %v112
    %v320 = vunpack.c.l.b16 %v113
    %v321 = vunpack.c.h.b16 %v113
    %v322 = vunpack.c.l.b16 %v114
    %v323 = vunpack.c.h.b16 %v114
    %v324 = vpack.c.b16 %v200, %v196
    %v325 = vpack.c.b16 %v201, %v197
    %v326 = vpack.c.b16 %v202, %v198
    %v327 = vpack.c.b16 %v203, %v199
    %v328 = vpack.c.b16 %v208, %v204
    %v329 = vpack.c.b16 %v209, %v205
    %v330 = vpack.c.b16 %v210, %v206
    %v331 = vpack.c.b16 %v211, %v207
    %v332 = vpack.c.b16 %v216, %v212
    %v333 = vpack.c.b16 %v217, %v213
    %v334 = vpack.c.b16 %v218, %v214
    %v335 = vpack.c.b16 %v219, %v215
    %v336 = vpack.c.b16 %v224, %v220
    %v337 = vpack.c.b16 %v225, %v221
    %v338 = vpack.c.b16 %v226, %v222
    %v339 = vpack.c.b16 %v227, %v223
    %v340 = vpack.c.b16 %v232, %v228
    %v341 = vpack.c.b16 %v233, %v229
    %v342 = vpack.c.b16 %v234, %v230
    %v343 = vpack.c.b16 %v235, %v231
    %v344 = vpack.c.b16 %v240, %v236
    %v345 = vpack.c.b16 %v241, %v237
    %v346 = vpack.c.b16 %v242, %v238
    %v347 = vpack.c.b16 %v243, %v239
    %v348 = vpack.c.b16 %v248, %v244
    %v349 = vpack.c.b16 %v249, %v245
    %v350 = vpack.c.b16 %v250, %v246
    %v351 = vpack.c.b16 %v251, %v247
    %v352 = vpack.c.b16 %v256, %v252
    %v353 = vpack.c.b16 %v257, %v253
    %v354 = vpack.c.b16 %v258, %v254
    %v355 = vpack.c.b16 %v259, %v255
    %v356 = vpack.c.b16 %v264, %v260
    %v357 = vpack.c.b16 %v265, %v261
    %v358 = vpack.c.b16 %v266, %v262
    %v359 = vpack.c.b16 %v267, %v263
    %v360 = vpack.c.b16 %v272, %v268
    %v361 = vpack.c.b16 %v273, %v269
    %v362 = vpack.c.b16 %v274, %v270
    %v363 = vpack.c.b16 %v275, %v271
    %v364 = vpack.c.b16 %v280, %v276
    %v365 = vpack.c.b16 %v281, %v277
    %v366 = vpack.c.b16 %v282, %v278
    %v367 = vpack.c.b16 %v283, %v279
    %v368 = vpack.c.b16 %v288, %v284
    %v369 = vpack.c.b16 %v289, %v285
    %v370 = vpack.c.b16 %v290, %v286
    %v371 = vpack.c.b16 %v291, %v287
    %v372 = vpack.c.b16 %v296, %v292
    %v373 = vpack.c.b16 %v297, %v293
    %v374 = vpack.c.b16 %v298, %v294
    %v375 = vpack.c.b16 %v299, %v295
    %v376 = vpack.c.b16 %v304, %v300
    %v377 = vpack.c.b16 %v305, %v301
    %v378 = vpack.c.b16 %v306, %v302
    %v379 = vpack.c.b16 %v307, %v303
    %v380 = vpack.c.b16 %v312, %v308
    %v381 = vpack.c.b16 %v313, %v309
    %v382 = vpack.c.b16 %v314, %v310
    %v383 = vpack.c.b16 %v315, %v311
    %v384 = vpack.c.b16 %v320, %v316
    %v385 = vpack.c.b16 %v321, %v317
    %v386 = vpack.c.b16 %v322, %v318
    %v387 = vpack.c.b16 %v323, %v319
    %452 = vmatpush.bf16.msra.mxu0 %v352
    %453 = vmatpush.bf16.msra.mxu0 %v348
    %454 = vmatpush.bf16.msra.mxu0 %v344
    %455 = vmatpush.bf16.msra.mxu0 %v340
    %456 = vmatpush.bf16.msra.mxu0 %v336
    %457 = vmatpush.bf16.msra.mxu0 %v332
    %458 = vmatpush.bf16.msra.mxu0 %v328
    %459 = vmatpush.bf16.msra.mxu0 %v324
    %460 = vmatmul.bf16.gmra.mxu0 %v128
    %v461 = vpop.f32.mrf.mxu0
    %v462 = vadd.f32 %v117, %v461
    %v463 = vpop.f32.mrf.mxu0
    %464 = vdwg.mxu0
    %465 = vmatpush.bf16.msra.mxu0 %v384
    %466 = vmatpush.bf16.msra.mxu0 %v380
    %467 = vmatpush.bf16.msra.mxu0 %v376
    %468 = vmatpush.bf16.msra.mxu0 %v372
    %469 = vmatpush.bf16.msra.mxu0 %v368
    %470 = vmatpush.bf16.msra.mxu0 %v364
    %471 = vmatpush.bf16.msra.mxu0 %v360
    %472 = vmatpush.bf16.msra.mxu0 %v356
    %473 = vmatmul.bf16.gmra.mxu0 %v129
    %v474 = vpop.f32.mrf.mxu0
    %v475 = vadd.f32 %v462, %v474
    %v476 = vpop.f32.mrf.mxu0
    %477 = vdwg.mxu0
    %478 = vmatpush.bf16.msra.mxu0 %v353
    %479 = vmatpush.bf16.msra.mxu0 %v349
    %480 = vmatpush.bf16.msra.mxu0 %v345
    %481 = vmatpush.bf16.msra.mxu0 %v341
    %482 = vmatpush.bf16.msra.mxu0 %v337
    %483 = vmatpush.bf16.msra.mxu0 %v333
    %484 = vmatpush.bf16.msra.mxu0 %v329
    %485 = vmatpush.bf16.msra.mxu0 %v325
    %486 = vmatmul.bf16.gmra.mxu0 %v128
    %v487 = vpop.f32.mrf.mxu0
    %v488 = vadd.f32 %v118, %v487
    %v489 = vpop.f32.mrf.mxu0
    %490 = vdwg.mxu0
    %491 = vmatpush.bf16.msra.mxu0 %v385
    %492 = vmatpush.bf16.msra.mxu0 %v381
    %493 = vmatpush.bf16.msra.mxu0 %v377
    %494 = vmatpush.bf16.msra.mxu0 %v373
    %495 = vmatpush.bf16.msra.mxu0 %v369
    %496 = vmatpush.bf16.msra.mxu0 %v365
    %497 = vmatpush.bf16.msra.mxu0 %v361
    %498 = vmatpush.bf16.msra.mxu0 %v357
    %499 = vmatmul.bf16.gmra.mxu0 %v129
    %v500 = vpop.f32.mrf.mxu0
    %v501 = vadd.f32 %v488, %v500
    %v502 = vpop.f32.mrf.mxu0
    %503 = vdwg.mxu0
    %504 = vmatpush.bf16.msra.mxu0 %v354
    %505 = vmatpush.bf16.msra.mxu0 %v350
    %506 = vmatpush.bf16.msra.mxu0 %v346
    %507 = vmatpush.bf16.msra.mxu0 %v342
    %508 = vmatpush.bf16.msra.mxu0 %v338
    %509 = vmatpush.bf16.msra.mxu0 %v334
    %510 = vmatpush.bf16.msra.mxu0 %v330
    %511 = vmatpush.bf16.msra.mxu0 %v326
    %512 = vmatmul.bf16.gmra.mxu0 %v128
    %v513 = vpop.f32.mrf.mxu0
    %v514 = vadd.f32 %v119, %v513
    %v515 = vpop.f32.mrf.mxu0
    %516 = vdwg.mxu0
    %517 = vmatpush.bf16.msra.mxu0 %v386
    %518 = vmatpush.bf16.msra.mxu0 %v382
    %519 = vmatpush.bf16.msra.mxu0 %v378
    %520 = vmatpush.bf16.msra.mxu0 %v374
    %521 = vmatpush.bf16.msra.mxu0 %v370
    %522 = vmatpush.bf16.msra.mxu0 %v366
    %523 = vmatpush.bf16.msra.mxu0 %v362
    %524 = vmatpush.bf16.msra.mxu0 %v358
    %525 = vmatmul.bf16.gmra.mxu0 %v129
    %v526 = vpop.f32.mrf.mxu0
    %v527 = vadd.f32 %v514, %v526
    %v528 = vpop.f32.mrf.mxu0
    %529 = vdwg.mxu0
    %530 = vmatpush.bf16.msra.mxu0 %v355
    %531 = vmatpush.bf16.msra.mxu0 %v351
    %532 = vmatpush.bf16.msra.mxu0 %v347
    %533 = vmatpush.bf16.msra.mxu0 %v343
    %534 = vmatpush.bf16.msra.mxu0 %v339
    %535 = vmatpush.bf16.msra.mxu0 %v335
    %536 = vmatpush.bf16.msra.mxu0 %v331
    %537 = vmatpush.bf16.msra.mxu0 %v327
    %538 = vmatmul.bf16.gmra.mxu0 %v128
    %v539 = vpop.f32.mrf.mxu0
    %v540 = vadd.f32 %v120, %v539
    %v541 = vpop.f32.mrf.mxu0
    %542 = vdwg.mxu0
    %543 = vmatpush.bf16.msra.mxu0 %v387
    %544 = vmatpush.bf16.msra.mxu0 %v383
    %545 = vmatpush.bf16.msra.mxu0 %v379
    %546 = vmatpush.bf16.msra.mxu0 %v375
    %547 = vmatpush.bf16.msra.mxu0 %v371
    %548 = vmatpush.bf16.msra.mxu0 %v367
    %549 = vmatpush.bf16.msra.mxu0 %v363
    %550 = vmatpush.bf16.msra.mxu0 %v359
    %551 = vmatmul.bf16.gmra.mxu0 %v129
    %v552 = vpop.f32.mrf.mxu0
    %v553 = vadd.f32 %v540, %v552
    %v554 = vpop.f32.mrf.mxu0
    %555 = vdwg.mxu0
    %v556 = vmul.f32 %v475, %v475
    %v557 = vmul.f32 %v501, %v501
    %v558 = vmul.f32 %v527, %v527
    %v559 = vmul.f32 %v553, %v553
    %v560 = vadd.f32 %v556, %v557
    %v561 = vadd.f32 %v560, %v558
    %v562 = vadd.f32 %v561, %v559
    %563 = vadd.xlane.f32.xlu0 %v562
    %v564 = vpop.xlane.xlu0 %563
    %v565 = vmax.f32 %v564, 1e-24
    %v566 = vrsqrt.pop %v565
    %v567 = vmul.f32 %v566, %v565
    %v568 = vmul.f32 %v567, %v566
    %v569 = vmul.f32 0.5, %v568
    %v570 = vsub.f32 1.5, %v569
    %v571 = vmul.f32 %v566, %v570
    %vm572 = vweird.f32 %v565
    %vm573 = vweird.f32 %v566
    %vm574 = vmor %vm572, %vm573
    %v575 = vsel %vm574, %v566, %v571
    %v576 = vmul.f32 %v575, 20.0
    %v577 = vmul.f32 %v475, %v576
    %v578 = vmul.f32 %v501, %v576
    %v579 = vmul.f32 %v527, %v576
    %v580 = vmul.f32 %v553, %v576
    %v581 = vpack.c.bf16 %v577, %v577
    %v582 = vpack.c.bf16 %v578, %v578
    %v583 = vpack.c.bf16 %v579, %v579
    %v584 = vpack.c.bf16 %v580, %v580
    %v585 = vld [vmem:[#allocation5] sm:$0xf]
    %v586 = vld [vmem:[#allocation5 + $0x4] sm:$0xf]
    %v587 = vld [vmem:[#allocation5 + $0x8] sm:$0xf]
    %v588 = vld [vmem:[#allocation5 + $0xc] sm:$0xf]
    %v589 = vld [vmem:[#allocation5 + $0x10] sm:$0xf]
    %v590 = vld [vmem:[#allocation5 + $0x14] sm:$0xf]
    %v591 = vld [vmem:[#allocation5 + $0x18] sm:$0xf]
    %v592 = vld [vmem:[#allocation5 + $0x1c] sm:$0xf]
    %v593 = vld [vmem:[#allocation5 + $0x20] sm:$0xf]
    %v594 = vld [vmem:[#allocation5 + $0x24] sm:$0xf]
    %v595 = vld [vmem:[#allocation5 + $0x28] sm:$0xf]
    %v596 = vld [vmem:[#allocation5 + $0x2c] sm:$0xf]
    %v597 = vld [vmem:[#allocation5 + $0x30] sm:$0xf]
    %v598 = vld [vmem:[#allocation5 + $0x34] sm:$0xf]
    %v599 = vld [vmem:[#allocation5 + $0x38] sm:$0xf]
    %v600 = vld [vmem:[#allocation5 + $0x3c] sm:$0xf]
    %v601 = vld [vmem:[#allocation5 + $0x40] sm:$0xf]
    %v602 = vld [vmem:[#allocation5 + $0x44] sm:$0xf]
    %v603 = vld [vmem:[#allocation5 + $0x48] sm:$0xf]
    %v604 = vld [vmem:[#allocation5 + $0x4c] sm:$0xf]
    %v605 = vld [vmem:[#allocation5 + $0x50] sm:$0xf]
    %v606 = vld [vmem:[#allocation5 + $0x54] sm:$0xf]
    %v607 = vld [vmem:[#allocation5 + $0x58] sm:$0xf]
    %v608 = vld [vmem:[#allocation5 + $0x5c] sm:$0xf]
    %v609 = vld [vmem:[#allocation5 + $0x60] sm:$0xf]
    %v610 = vld [vmem:[#allocation5 + $0x64] sm:$0xf]
    %v611 = vld [vmem:[#allocation5 + $0x68] sm:$0xf]
    %v612 = vld [vmem:[#allocation5 + $0x6c] sm:$0xf]
    %v613 = vld [vmem:[#allocation5 + $0x70] sm:$0xf]
    %v614 = vld [vmem:[#allocation5 + $0x74] sm:$0xf]
    %v615 = vld [vmem:[#allocation5 + $0x78] sm:$0xf]
    %v616 = vld [vmem:[#allocation5 + $0x7c] sm:$0xf]
    %v617 = vld [vmem:[#allocation5 + $0x80] sm:$0xf]
    %v618 = vld [vmem:[#allocation5 + $0x84] sm:$0xf]
    %v619 = vld [vmem:[#allocation5 + $0x88] sm:$0xf]
    %v620 = vld [vmem:[#allocation5 + $0x8c] sm:$0xf]
    %v621 = vld [vmem:[#allocation5 + $0x90] sm:$0xf]
    %v622 = vld [vmem:[#allocation5 + $0x94] sm:$0xf]
    %v623 = vld [vmem:[#allocation5 + $0x98] sm:$0xf]
    %v624 = vld [vmem:[#allocation5 + $0x9c] sm:$0xf]
    %v625 = vld [vmem:[#allocation5 + $0xa0] sm:$0xf]
    %v626 = vld [vmem:[#allocation5 + $0xa4] sm:$0xf]
    %v627 = vld [vmem:[#allocation5 + $0xa8] sm:$0xf]
    %v628 = vld [vmem:[#allocation5 + $0xac] sm:$0xf]
    %v629 = vld [vmem:[#allocation5 + $0xb0] sm:$0xf]
    %v630 = vld [vmem:[#allocation5 + $0xb4] sm:$0xf]
    %v631 = vld [vmem:[#allocation5 + $0xb8] sm:$0xf]
    %v632 = vld [vmem:[#allocation5 + $0xbc] sm:$0xf]
    %v633 = vld [vmem:[#allocation5 + $0xc0] sm:$0xf]
    %v634 = vld [vmem:[#allocation5 + $0xc4] sm:$0xf]
    %v635 = vld [vmem:[#allocation5 + $0xc8] sm:$0xf]
    %v636 = vld [vmem:[#allocation5 + $0xcc] sm:$0xf]
    %v637 = vld [vmem:[#allocation5 + $0xd0] sm:$0xf]
    %v638 = vld [vmem:[#allocation5 + $0xd4] sm:$0xf]
    %v639 = vld [vmem:[#allocation5 + $0xd8] sm:$0xf]
    %v640 = vld [vmem:[#allocation5 + $0xdc] sm:$0xf]
    %v641 = vld [vmem:[#allocation5 + $0xe0] sm:$0xf]
    %v642 = vld [vmem:[#allocation5 + $0xe4] sm:$0xf]
    %v643 = vld [vmem:[#allocation5 + $0xe8] sm:$0xf]
    %v644 = vld [vmem:[#allocation5 + $0xec] sm:$0xf]
    %v645 = vld [vmem:[#allocation5 + $0xf0] sm:$0xf]
    %v646 = vld [vmem:[#allocation5 + $0xf4] sm:$0xf]
    %v647 = vld [vmem:[#allocation5 + $0xf8] sm:$0xf]
    %v648 = vld [vmem:[#allocation5 + $0xfc] sm:$0xf]
    %v713 = vunpack.c.l.b16 %v585
    %v714 = vunpack.c.l.b16 %v586
    %v715 = vunpack.c.l.b16 %v587
    %v716 = vunpack.c.l.b16 %v588
    %v717 = vunpack.c.l.b16 %v589
    %v718 = vunpack.c.l.b16 %v590
    %v719 = vunpack.c.l.b16 %v591
    %v720 = vunpack.c.l.b16 %v592
    %v721 = vunpack.c.l.b16 %v593
    %v722 = vunpack.c.l.b16 %v594
    %v723 = vunpack.c.l.b16 %v595
    %v724 = vunpack.c.l.b16 %v596
    %v725 = vunpack.c.l.b16 %v597
    %v726 = vunpack.c.l.b16 %v598
    %v727 = vunpack.c.l.b16 %v599
    %v728 = vunpack.c.l.b16 %v600
    %v729 = vunpack.c.l.b16 %v601
    %v730 = vunpack.c.l.b16 %v602
    %v731 = vunpack.c.l.b16 %v603
    %v732 = vunpack.c.l.b16 %v604
    %v733 = vunpack.c.l.b16 %v605
    %v734 = vunpack.c.l.b16 %v606
    %v735 = vunpack.c.l.b16 %v607
    %v736 = vunpack.c.l.b16 %v608
    %v737 = vunpack.c.l.b16 %v609
    %v738 = vunpack.c.l.b16 %v610
    %v739 = vunpack.c.l.b16 %v611
    %v740 = vunpack.c.l.b16 %v612
    %v741 = vunpack.c.l.b16 %v613
    %v742 = vunpack.c.l.b16 %v614
    %v743 = vunpack.c.l.b16 %v615
    %v744 = vunpack.c.l.b16 %v616
    %v745 = vunpack.c.l.b16 %v617
    %v746 = vunpack.c.l.b16 %v618
    %v747 = vunpack.c.l.b16 %v619
    %v748 = vunpack.c.l.b16 %v620
    %v749 = vunpack.c.l.b16 %v621
    %v750 = vunpack.c.l.b16 %v622
    %v751 = vunpack.c.l.b16 %v623
    %v752 = vunpack.c.l.b16 %v624
    %v753 = vunpack.c.l.b16 %v625
    %v754 = vunpack.c.l.b16 %v626
    %v755 = vunpack.c.l.b16 %v627
    %v756 = vunpack.c.l.b16 %v628
    %v757 = vunpack.c.l.b16 %v629
    %v758 = vunpack.c.l.b16 %v630
    %v759 = vunpack.c.l.b16 %v631
    %v760 = vunpack.c.l.b16 %v632
    %v761 = vunpack.c.l.b16 %v633
    %v762 = vunpack.c.l.b16 %v634
    %v763 = vunpack.c.l.b16 %v635
    %v764 = vunpack.c.l.b16 %v636
    %v765 = vunpack.c.l.b16 %v637
    %v766 = vunpack.c.l.b16 %v638
    %v767 = vunpack.c.l.b16 %v639
    %v768 = vunpack.c.l.b16 %v640
    %v769 = vunpack.c.l.b16 %v641
    %v770 = vunpack.c.l.b16 %v642
    %v771 = vunpack.c.l.b16 %v643
    %v772 = vunpack.c.l.b16 %v644
    %v773 = vunpack.c.l.b16 %v645
    %v774 = vunpack.c.l.b16 %v646
    %v775 = vunpack.c.l.b16 %v647
    %v776 = vunpack.c.l.b16 %v648
    %v777 = vpack.c.b16 %v714, %v713
    %v778 = vpack.c.b16 %v716, %v715
    %v779 = vpack.c.b16 %v718, %v717
    %v780 = vpack.c.b16 %v720, %v719
    %v781 = vpack.c.b16 %v722, %v721
    %v782 = vpack.c.b16 %v724, %v723
    %v783 = vpack.c.b16 %v726, %v725
    %v784 = vpack.c.b16 %v728, %v727
    %v785 = vpack.c.b16 %v730, %v729
    %v786 = vpack.c.b16 %v732, %v731
    %v787 = vpack.c.b16 %v734, %v733
    %v788 = vpack.c.b16 %v736, %v735
    %v789 = vpack.c.b16 %v738, %v737
    %v790 = vpack.c.b16 %v740, %v739
    %v791 = vpack.c.b16 %v742, %v741
    %v792 = vpack.c.b16 %v744, %v743
    %v793 = vpack.c.b16 %v746, %v745
    %v794 = vpack.c.b16 %v748, %v747
    %v795 = vpack.c.b16 %v750, %v749
    %v796 = vpack.c.b16 %v752, %v751
    %v797 = vpack.c.b16 %v754, %v753
    %v798 = vpack.c.b16 %v756, %v755
    %v799 = vpack.c.b16 %v758, %v757
    %v800 = vpack.c.b16 %v760, %v759
    %v801 = vpack.c.b16 %v762, %v761
    %v802 = vpack.c.b16 %v764, %v763
    %v803 = vpack.c.b16 %v766, %v765
    %v804 = vpack.c.b16 %v768, %v767
    %v805 = vpack.c.b16 %v770, %v769
    %v806 = vpack.c.b16 %v772, %v771
    %v807 = vpack.c.b16 %v774, %v773
    %v808 = vpack.c.b16 %v776, %v775
    %841 = vmatpush.bf16.msra.mxu0 %v784
    %842 = vmatpush.bf16.msra.mxu0 %v783
    %843 = vmatpush.bf16.msra.mxu0 %v782
    %844 = vmatpush.bf16.msra.mxu0 %v781
    %845 = vmatpush.bf16.msra.mxu0 %v780
    %846 = vmatpush.bf16.msra.mxu0 %v779
    %847 = vmatpush.bf16.msra.mxu0 %v778
    %848 = vmatpush.bf16.msra.mxu0 %v777
    %849 = vmatmul.bf16.gmra.mxu0 %v581
    %v850 = vpop.f32.mrf.mxu0
    %v851 = vadd.f32 0.0, %v850
    %v852 = vpop.f32.mrf.mxu0
    %853 = vdwg.mxu0
    %854 = vmatpush.bf16.msra.mxu0 %v792
    %855 = vmatpush.bf16.msra.mxu0 %v791
    %856 = vmatpush.bf16.msra.mxu0 %v790
    %857 = vmatpush.bf16.msra.mxu0 %v789
    %858 = vmatpush.bf16.msra.mxu0 %v788
    %859 = vmatpush.bf16.msra.mxu0 %v787
    %860 = vmatpush.bf16.msra.mxu0 %v786
    %861 = vmatpush.bf16.msra.mxu0 %v785
    %862 = vmatmul.bf16.gmra.mxu0 %v582
    %v863 = vpop.f32.mrf.mxu0
    %v864 = vadd.f32 %v851, %v863
    %v865 = vpop.f32.mrf.mxu0
    %866 = vdwg.mxu0
    %867 = vmatpush.bf16.msra.mxu0 %v800
    %868 = vmatpush.bf16.msra.mxu0 %v799
    %869 = vmatpush.bf16.msra.mxu0 %v798
    %870 = vmatpush.bf16.msra.mxu0 %v797
    %871 = vmatpush.bf16.msra.mxu0 %v796
    %872 = vmatpush.bf16.msra.mxu0 %v795
    %873 = vmatpush.bf16.msra.mxu0 %v794
    %874 = vmatpush.bf16.msra.mxu0 %v793
    %875 = vmatmul.bf16.gmra.mxu0 %v583
    %v876 = vpop.f32.mrf.mxu0
    %v877 = vadd.f32 %v864, %v876
    %v878 = vpop.f32.mrf.mxu0
    %879 = vdwg.mxu0
    %880 = vmatpush.bf16.msra.mxu0 %v808
    %881 = vmatpush.bf16.msra.mxu0 %v807
    %882 = vmatpush.bf16.msra.mxu0 %v806
    %883 = vmatpush.bf16.msra.mxu0 %v805
    %884 = vmatpush.bf16.msra.mxu0 %v804
    %885 = vmatpush.bf16.msra.mxu0 %v803
    %886 = vmatpush.bf16.msra.mxu0 %v802
    %887 = vmatpush.bf16.msra.mxu0 %v801
    %888 = vmatmul.bf16.gmra.mxu0 %v584
    %v889 = vpop.f32.mrf.mxu0
    %v890 = vadd.f32 %v877, %v889
    %v891 = vpop.f32.mrf.mxu0
    %892 = vdwg.mxu0
    %893 = vst [vmem:[#allocation7] sm:$0xff] %v890
    // Predicated region
    $region26: #{forward.1} parent=1 // pred_check
      _
    $region27: #{forward.1} parent=1 // pred_check_branch
      %895 = sbr.rel (0) target = $region29
    $region28: #{forward.1} parent=1 // pred_region
      %897 = vsyncadd [#allocation4], 0
      %s899 = sshll.u32 [#allocation7], 4
      %s900 = int_to_ptr.vmem [resolvable:$true] %s899
      %s901 = sshll.u32 %s4, 4
      %s902 = int_to_ptr.hbm [resolvable:$true] %s901
      %904 = dma.vmem_to_hbm [thread:$0]  %s900, 128, %s902, [#allocation4]
    $region29: #{forward.1} parent=1 // pred_fallthru
      _
    // Predicated region
    $region30: #{forward.1} parent=1 // pred_check
      _
    $region31: #{forward.1} parent=1 // pred_check_branch
      %906 = sbr.rel (0) target = $region33
    $region32: #{forward.1} parent=1 // pred_region
      %908 = dma.done [#allocation4], 128
    $region33: #{forward.1} parent=1 // pred_fallthru
      _
    %909 = vsyncpa [#allocation3], 1
    %910 = vsyncpa [#allocation6], 1
    %911 = vsyncpa [#allocation4], 1

</llo_original>
